<compile_context>
chip_gen: v7x
topology: tpu7x:2x2x1
jax: 0.10.0
libtpu: 0.0.40
codegen_flags: <defaults>
</compile_context>

<pallas_src>
import jax
import jax.numpy as jnp
from jax.experimental import pallas as pl
from jax.experimental.pallas import tpu as pltpu


def _fc2_kernel(x_ref, w_ref, b_ref, o_ref):
    # x_ref: [bm, P*H] packed activations (VMEM, streamed)
    # w_ref: [P*H, P]  block-diagonal weight (VMEM, resident across the grid)
    # b_ref: [1]       bias (SMEM scalar)
    # o_ref: [bm, P]   packed potentials
    # NOTE: pass precision=jax.lax.Precision.HIGHEST to jnp.dot if strict f32
    # parity with PyTorch's float32 Linear is required.
    o_ref[...] = (
        jnp.dot(x_ref[...], w_ref[...], preferred_element_type=jnp.float32)
        + b_ref[0]
    ).astype(o_ref.dtype)


def vector2pot_forward(vector, w2, b2, *, tile_n=2048, force_pallas=False):
    """potential = vector @ w2 + b2   (== torch nn.Linear(H, 1) forward).

    vector: (N, H) float32
    w2:     weight with H elements; (H, 1) pre-transposed or (1, H) torch layout
    b2:     bias, shape (1,) or scalar
    """
    N, H = vector.shape
    w_col = w2.reshape(-1).astype(jnp.float32)
    assert w_col.shape[0] == H
    b = b2.reshape(-1)[:1].astype(jnp.float32)           # (1,) -> SMEM scalar

    # Tiny problems: pallas_call fixed cost dwarfs the work -> let XLA fuse it.
    if not force_pallas and N * H < 16 * 1024:
        return vector.astype(jnp.float32) @ w_col.reshape(H, 1) + b.reshape(1, 1)

    # Lane packing: P original rows per packed row so loads are 128-lane dense.
    P = 128 // H if (0 < H <= 128 and 128 % H == 0) else 1
    if P > 1 and (N % P != 0 or N // P < 8):
        # TODO(synk): pad N to a multiple of P to keep lane packing for awkward batch sizes.
        P = 1
    Np, Hp = N // P, H * P
    x = vector.reshape(Np, Hp)                            # contiguous -> free reshape

    # Block-diagonal weight: column j holds w2 in rows [j*H, (j+1)*H).
    w_bd = jnp.kron(jnp.eye(P, dtype=jnp.float32), w_col.reshape(H, 1))   # (Hp, P)

    # Packed rows per grid step; sublane(8)-aligned blocks unless we take the
    # whole (small) array as a single block.
    bm = max(8, tile_n // P)
    if bm >= Np:
        bm = Np                                           # block == full dim is legal
    else:
        bm -= bm % 8
    grid = (pl.cdiv(Np, bm),)

    out_packed = pl.pallas_call(
        _fc2_kernel,
        out_shape=jax.ShapeDtypeStruct((Np, P), jnp.float32),
        grid=grid,
        in_specs=[
            pl.BlockSpec((bm, Hp), lambda i: (i, 0)),             # streaming activations
            pl.BlockSpec((Hp, P), lambda i: (0, 0)),              # resident weight
            pl.BlockSpec(memory_space=pltpu.MemorySpace.SMEM),    # bias scalar
        ],
        out_specs=pl.BlockSpec((bm, P), lambda i: (i, 0)),
        compiler_params=pltpu.CompilerParams(
            dimension_semantics=("parallel",),    # v7x: shard the row grid over 2 TCs
        ),
    )(x, w_bd, b)

    # Packed (Np, P) row-major flattens exactly to the original row order.
    return out_packed.reshape(N, 1)


if __name__ == "__main__":
    # Shapes consistent with the module: last_layer_hidden=32, batch=8.
    LAST_LAYER_HIDDEN = 32
    BATCH = 8

    key = jax.random.PRNGKey(0)
    k_x, k_w, k_b, k_big = jax.random.split(key, 4)

    # Deterministic parameter init (mimics nn.Linear uniform(-1/sqrt(H), 1/sqrt(H))).
    bound = 1.0 / jnp.sqrt(jnp.float32(LAST_LAYER_HIDDEN))
    w2 = jax.random.uniform(
        k_w, (LAST_LAYER_HIDDEN, 1), jnp.float32, minval=-bound, maxval=bound
    )
    b2 = jax.random.uniform(k_b, (1,), jnp.float32, minval=-bound, maxval=bound)

    # --- small case (module-default size); force the Pallas path so the kernel runs ---
    vector = jax.random.normal(k_x, (BATCH, LAST_LAYER_HIDDEN), jnp.float32)
    out = jax.block_until_ready(vector2pot_forward(vector, w2, b2, force_pallas=True))
    ref = vector @ w2 + b2.reshape(1, 1)
    assert out.shape == (BATCH, 1)
    assert jnp.allclose(out, ref, atol=1e-4, rtol=1e-4)

    # --- larger batch: exercises lane packing, multi-tile grid and a partial last block ---
    N_BIG = 4000
    big = jax.random.normal(k_big, (N_BIG, LAST_LAYER_HIDDEN), jnp.float32)
    out_big = jax.block_until_ready(vector2pot_forward(big, w2, b2))
    ref_big = big @ w2 + b2.reshape(1, 1)
    assert out_big.shape == (N_BIG, 1)
    assert jnp.allclose(out_big, ref_big, atol=1e-4, rtol=1e-4)

    print("KERNEL_OK")
</pallas_src>

<mosaic_0001>
module attributes {stable_mosaic.version = 11 : i64} {
  func.func @_fc2_kernel(%arg0: i32, %arg1: memref<8x32xf32, #tpu.memory_space<vmem>>, %arg2: memref<32x1xf32, #tpu.memory_space<vmem>>, %arg3: memref<1xf32, #tpu.memory_space<smem>>, %arg4: memref<8x1xf32, #tpu.memory_space<vmem>>) attributes {dimension_semantics = [#tpu.dimension_semantics<parallel>], iteration_bounds = array<i64: 1>, scalar_prefetch = 0 : i64, scratch_operands = 0 : i64, tpu.core_type = #tpu.core_type<tc>, window_params = [{transform_indices = @transform_0, window_bounds = array<i64: 8, 32>}, {pipeline_mode = #tpu.pipeline_mode<synchronous>, transform_indices = @transform_1, window_bounds = array<i64: 32, 1>}, {transform_indices = @transform_2, window_bounds = array<i64: 1>}, {transform_indices = @transform_3, window_bounds = array<i64: 8, 1>}]} {
    %c0 = arith.constant 0 : index
    %c0_0 = arith.constant 0 : index
    %0 = vector.load %arg1[%c0, %c0_0] : memref<8x32xf32, #tpu.memory_space<vmem>>, vector<8x32xf32>
    %c0_1 = arith.constant 0 : index
    %c0_2 = arith.constant 0 : index
    %1 = vector.load %arg2[%c0_1, %c0_2] : memref<32x1xf32, #tpu.memory_space<vmem>>, vector<32x1xf32>
    %cst = arith.constant dense<0.000000e+00> : vector<8x1xf32>
    %2 = tpu.matmul %0, %1, %cst {dimension_numbers = #tpu.dot_dimension_numbers<[1], [0], [0], [1], [0, 0, 1, 1], [], []>} : vector<8x32xf32>, vector<32x1xf32>, vector<8x1xf32> -> vector<8x1xf32>
    %c0_3 = arith.constant 0 : index
    %3 = memref.load %arg3[%c0_3] : memref<1xf32, #tpu.memory_space<smem>>
    %4 = vector.broadcast %3 : f32 to vector<8x1xf32>
    %5 = arith.addf %2, %4 : vector<8x1xf32>
    %c0_4 = arith.constant 0 : index
    %c0_5 = arith.constant 0 : index
    %6 = vector.load %arg4[%c0_4, %c0_5] : memref<8x1xf32, #tpu.memory_space<vmem>>, vector<8x1xf32>
    tpu.vector_store %arg4[%c0_4, %c0_5], %5 {strides = array<i32>} : memref<8x1xf32, #tpu.memory_space<vmem>>, vector<8x1xf32>,
    return
  }
  func.func @transform_0(%arg0: i32) -> (i32, i32) {
    %c0_i32 = arith.constant 0 : i32
    %c0_i32_0 = arith.constant 0 : i32
    return %arg0, %c0_i32 : i32, i32
  }
  func.func @transform_1(%arg0: i32) -> (i32, i32) {
    %c0_i32 = arith.constant 0 : i32
    %c0_i32_0 = arith.constant 0 : i32
    %c0_i32_1 = arith.constant 0 : i32
    return %c0_i32, %c0_i32_0 : i32, i32
  }
  func.func @transform_2(%arg0: i32) -> i32 {
    %c0_i32 = arith.constant 0 : i32
    %c0_i32_0 = arith.constant 0 : i32
    return %c0_i32 : i32
  }
  func.func @transform_3(%arg0: i32) -> (i32, i32) {
    %c0_i32 = arith.constant 0 : i32
    %c0_i32_0 = arith.constant 0 : i32
    return %arg0, %c0_i32 : i32, i32
  }
}

</mosaic_0001>

<llo_original>
// kernel: tpu_custom_call.1
$region0: #{tpu_custom_call.1}
  #allocation0 [shape = 'u32[]', space=smem, size = 0x4, offset = 0x4, fixed_abs, tag = 'smem constant byte address 0x4 - core index']
  #allocation1 [shape = 'u32[144,128]{1,0:T(1,128)}', space=vmem, size = 0x12000, scoped, tag = 'internal scratch']
  #allocation2 [shape = 'f32[1]{0:T(128)S(6)}', space=smem, size = 0x200, scoped, tag = 'scoped memory for tpu_custom_call.1']
  %s0 = inlined_call_operand.vmem [shape: f32[8,32], index: 0, kind: input, shape index: {}]
  %s1 = inlined_call_operand.vmem [shape: f32[32,1], index: 1, kind: input, shape index: {}]
  %s2 = inlined_call_operand.<no memory space> [shape: f32[1], index: 2, kind: input, shape index: {}]
  %s3 = inlined_call_operand.vmem [shape: f32[8,1], index: 3, kind: output, shape index: {}]
  %s4 = sld [smem:[#allocation0]]
  $region22: #{tpu_custom_call.1} parent=0
    _
  %s6 = ssub.s32 1, %s4
  %s7 = scalar_select 0, %s6, %s4
  %8 = sst [smem:[#allocation2]] %s2
  // Predicated region
  $region2: #{tpu_custom_call.1} parent=0 // pred_check
    _
  $region3: #{tpu_custom_call.1} parent=0 // pred_check_branch
    %10 = sbr.rel (0) target = $region5
  $region4: #{tpu_custom_call.1} parent=0 // pred_region
    _
  $region5: #{tpu_custom_call.1} parent=0 // pred_fallthru
    _
  // Predicated region
  $region6: #{tpu_custom_call.1} parent=0 // pred_check
    _
  $region7: #{tpu_custom_call.1} parent=0 // pred_check_branch
    %12 = sbr.rel (0) target = $region9
  $region8: #{tpu_custom_call.1} parent=0 // pred_region
    _
  $region9: #{tpu_custom_call.1} parent=0 // pred_fallthru
    _
  // Predicated region
  $region10: #{tpu_custom_call.1} parent=0 // pred_check
    _
  $region11: #{tpu_custom_call.1} parent=0 // pred_check_branch
    %14 = sbr.rel (0) target = $region13
  $region12: #{tpu_custom_call.1} parent=0 // pred_region
    _
  $region13: #{tpu_custom_call.1} parent=0 // pred_fallthru
    _
  %v15 = vld [vmem:[%s0] sm:$0xff]
  %v16 = vld [vmem:[%s1] sm:$0xff]
  %v17 = vld [vmem:[%s1 + $0x8] sm:$0xff]
  %v18 = vld [vmem:[%s1 + $0x10] sm:$0xff]
  %v19 = vld [vmem:[%s1 + $0x18] sm:$0xff]
  %s20 = sld [smem:[#allocation2]]
  %v21 = vstv %s20
  %vm22 = vcmask 261120
  %v24 = vsel %vm22, %v15, 0
  %26 = vmatprep.subr.mxu0 0.0
  %27 = vmatpush1.msra.mxu0 %v16
  %28 = vmatprep.subr.mxu0 0.0
  %29 = vmatpush1.msra.mxu0 %v17
  %30 = vmatprep.subr.mxu0 0.0
  %31 = vmatpush1.msra.mxu0 %v18
  %32 = vmatprep.subr.mxu0 0.0
  %33 = vmatpush1.msra.mxu0 %v19
  %34 = vmatprep.subr.mxu0 0.0
  %35 = vmatpush1.msra.mxu0 0.0
  %36 = vmatprep.subr.mxu0 0.0
  %37 = vmatpush1.msra.mxu0 0.0
  %38 = vmatprep.subr.mxu0 0.0
  %39 = vmatpush1.msra.mxu0 0.0
  %40 = vmatprep.subr.mxu0 0.0
  %41 = vmatpush1.msra.mxu0 0.0
  %42 = vmatprep.subr.mxu0 0.0
  %43 = vmatpush1.msra.mxu0 0.0
  %44 = vmatprep.subr.mxu0 0.0
  %45 = vmatpush1.msra.mxu0 0.0
  %46 = vmatprep.subr.mxu0 0.0
  %47 = vmatpush1.msra.mxu0 0.0
  %48 = vmatprep.subr.mxu0 0.0
  %49 = vmatpush1.msra.mxu0 0.0
  %50 = vmatprep.subr.mxu0 0.0
  %51 = vmatpush1.msra.mxu0 0.0
  %52 = vmatprep.subr.mxu0 0.0
  %53 = vmatpush1.msra.mxu0 0.0
  %54 = vmatprep.subr.mxu0 0.0
  %55 = vmatpush1.msra.mxu0 0.0
  %56 = vmatprep.subr.mxu0 0.0
  %57 = vmatpush1.msra.mxu0 0.0
  %58 = vmatprep.subr.mxu0 0.0
  %59 = vmatpush1.msra.mxu0 0.0
  %60 = vmatprep.subr.mxu0 0.0
  %61 = vmatpush1.msra.mxu0 0.0
  %62 = vmatprep.subr.mxu0 0.0
  %63 = vmatpush1.msra.mxu0 0.0
  %64 = vmatprep.subr.mxu0 0.0
  %65 = vmatpush1.msra.mxu0 0.0
  %66 = vmatprep.subr.mxu0 0.0
  %67 = vmatpush1.msra.mxu0 0.0
  %68 = vmatprep.subr.mxu0 0.0
  %69 = vmatpush1.msra.mxu0 0.0
  %70 = vmatprep.subr.mxu0 0.0
  %71 = vmatpush1.msra.mxu0 0.0
  %72 = vmatprep.subr.mxu0 0.0
  %73 = vmatpush1.msra.mxu0 0.0
  %74 = vmatprep.subr.mxu0 0.0
  %75 = vmatpush1.msra.mxu0 0.0
  %76 = vmatprep.subr.mxu0 0.0
  %77 = vmatpush1.msra.mxu0 0.0
  %78 = vmatprep.subr.mxu0 0.0
  %79 = vmatpush1.msra.mxu0 0.0
  %80 = vmatprep.subr.mxu0 0.0
  %81 = vmatpush1.msra.mxu0 0.0
  %82 = vmatprep.subr.mxu0 0.0
  %83 = vmatpush1.msra.mxu0 0.0
  %84 = vmatprep.subr.mxu0 0.0
  %85 = vmatpush1.msra.mxu0 0.0
  %86 = vmatprep.subr.mxu0 0.0
  %87 = vmatpush1.msra.mxu0 0.0
  %88 = vmatprep.subr.mxu0 0.0
  %89 = vmatpush1.msra.mxu0 0.0
  %90 = vmatprep.mubr.f32.mxu0 0.0
  %91 = vmatmul.mubr.f32.gmra.mrb[0].mxu0 %v24
  %v92 = vpop.f32.mrb[0].mxu0
  %v93 = vadd.f32 %v21, %v92
  %v94 = vpop.f32.mrb[0].mxu0
  %95 = vdwg.mxu0
  %vm96 = vcmask 7168
  %97 = vst.msk [vmem:[%s3] sm:$0xff] %vm96, %v93
  // Predicated region
  $region14: #{tpu_custom_call.1} parent=0 // pred_check
    _
  $region15: #{tpu_custom_call.1} parent=0 // pred_check_branch
    %99 = sbr.rel (0) target = $region17
  $region16: #{tpu_custom_call.1} parent=0 // pred_region
    _
  $region17: #{tpu_custom_call.1} parent=0 // pred_fallthru
    _
  // Predicated region
  $region18: #{tpu_custom_call.1} parent=0 // pred_check
    _
  $region19: #{tpu_custom_call.1} parent=0 // pred_check_branch
    %101 = sbr.rel (0) target = $region21
  $region20: #{tpu_custom_call.1} parent=0 // pred_region
    _
  $region21: #{tpu_custom_call.1} parent=0 // pred_fallthru
    _

</llo_original>
